<compile_context>
chip_gen: v5e
topology: v5e:2x2
jax: 0.10.0
libtpu: 0.0.40
codegen_flags: <defaults>
</compile_context>

<pallas_src>
import functools
from typing import NamedTuple

import numpy as np

import jax
import jax.numpy as jnp
from jax.experimental import pallas as pl
from jax.experimental.pallas import tpu as pltpu


def _round_up(n, m):
    return ((n + m - 1) // m) * m


# --------------------------------------------------------------------------- kernels
def _ffn_resident_kernel(x_ref, w1_ref, b1_ref, w2_ref, b2_ref, o_ref, *, n_chunks):
    """out = relu(x @ W1 + b1) @ W2 + b2 with W1/W2/b1/b2 fully resident in VMEM.

    The row tile is processed in `n_chunks` independent sub-chunks (static ref views)
    so the LLO scheduler can overlap chunk k's second matmul with chunk k+1's first.
    """
    w1 = w1_ref[...]                      # (Hp,  H2p) compute dtype
    w2 = w2_ref[...]                      # (H2p, Dp)  compute dtype
    b1 = b1_ref[...]                      # (1,   H2p) f32
    b2 = b2_ref[...]                      # (1,   Dp)  f32
    tm = x_ref.shape[0]
    cm = tm // n_chunks
    for c in range(n_chunks):             # static slices -> zero-cost ref views
        xs = x_ref[c * cm:(c + 1) * cm, :]
        h = jnp.dot(xs, w1, preferred_element_type=jnp.float32)
        h = jnp.maximum(h + b1, 0.0)
        o = jnp.dot(h.astype(w2.dtype), w2, preferred_element_type=jnp.float32)
        o_ref[c * cm:(c + 1) * cm, :] = (o + b2).astype(o_ref.dtype)


def _ffn_ktile_kernel(x_ref, w1_ref, b1_ref, w2_ref, b2_ref, o_ref, acc_ref):
    """K-tiled variant: grid axis 1 walks tiles of the intermediate (hidden//2) dim.

    Exact because ReLU is elementwise over that dim; partial products of the second
    matmul accumulate in an f32 VMEM scratch, written out on the last k step.
    """
    k = pl.program_id(1)

    @pl.when(k == 0)
    def _():
        acc_ref[...] = jnp.zeros_like(acc_ref)

    h = jnp.dot(x_ref[...], w1_ref[...], preferred_element_type=jnp.float32)
    h = jnp.maximum(h + b1_ref[...], 0.0)
    acc_ref[...] += jnp.dot(h.astype(w2_ref.dtype), w2_ref[...],
                            preferred_element_type=jnp.float32)

    @pl.when(k == pl.num_programs(1) - 1)
    def _():
        o_ref[...] = (acc_ref[...] + b2_ref[...]).astype(o_ref.dtype)


# ------------------------------------------------------------------ VMEM / tiling
def _vmem_budget_bytes():
    """Physical VMEM of the local chip minus headroom for Mosaic internal scratch."""
    try:
        cap = int(pltpu.get_tpu_info().vmem_capacity_bytes)
    except Exception:
        cap = 64 * 1024 * 1024            # conservative (v7x-sized) fallback
    return max(cap - 8 * 1024 * 1024, 24 * 1024 * 1024)


def _resident_vmem_bytes(tm, hp, h2p, dp, cbytes, obytes):
    return (2 * tm * hp * cbytes               # x tile (double-buffered)
            + 2 * tm * dp * obytes             # out tile (double-buffered)
            + (hp * h2p + h2p * dp) * cbytes   # W1, W2 (single-buffered, resident)
            + (h2p + dp) * 4                   # biases (f32, resident)
            + tm * h2p * (4 + cbytes)          # h in f32 + bf16 cast
            + tm * dp * 4)                     # second-matmul f32 result


def _ktile_vmem_bytes(tm, hp, tk, dp, cbytes, obytes):
    return (2 * tm * hp * cbytes
            + 2 * tm * dp * obytes
            + 2 * (hp * tk + tk * dp) * cbytes  # streamed weight tiles (double-buffered)
            + 2 * (tk + dp) * 4
            + tm * dp * 4                       # f32 accumulator scratch
            + tm * tk * (4 + cbytes)
            + tm * dp * 4)


def _choose_tiling(m, hp, h2p, dp, cbytes, obytes, budget, tm_max):
    m8 = _round_up(max(m, 1), 8)
    # Resident-weight path: sweep row tile, largest first (amortizes per-step overhead).
    for tm in (512, 256, 128, 64, 32, 16, 8):
        if tm > max(tm_max, 8):
            continue
        tm_eff = min(tm, m8)
        if _resident_vmem_bytes(tm_eff, hp, h2p, dp, cbytes, obytes) <= budget:
            return "resident", tm_eff, h2p
    # K-tiled fallback: weights streamed tile-by-tile over the intermediate dim.
    for tm in (256, 128, 64, 32, 16, 8):
        tm_eff = min(tm, m8)
        for tk in (1024, 512, 256, 128):
            if tk >= h2p or h2p % tk != 0:
                continue
            if _ktile_vmem_bytes(tm_eff, hp, tk, dp, cbytes, obytes) <= budget:
                return "ktile", tm_eff, tk
    return "ktile", min(8, m8), 128


# ----------------------------------------------------------------------- parameters
class FFNParams(NamedTuple):
    w1: jax.Array    # (Hp, H2p)  compute dtype
    b1: jax.Array    # (1,  H2p)  float32
    w2: jax.Array    # (H2p, Dp)  compute dtype
    b2: jax.Array    # (1,  Dp)   float32
    hidden: int
    h2: int
    dec: int


def prepare_ffn_params(w1, b1, w2, b2, compute_dtype=jnp.bfloat16):
    """Pad feature dims to lane multiples (128) and cast to the MXU compute dtype.

    Call ONCE (e.g. right after parameter init) and reuse across forward calls; this
    keeps the per-call path free of weight pad/cast HBM passes.  Zero padding is
    exact: padded hidden columns, intermediate units and dec columns have zero
    weights and zero bias, relu(0)=0, and padded outputs are sliced off.
    """
    hidden, h2 = w1.shape
    dec = w2.shape[1]
    hp, h2p, dp = _round_up(hidden, 128), _round_up(h2, 128), _round_up(dec, 128)

    def pad_cast(a, shape, dtype):
        if a.dtype != dtype:
            a = a.astype(dtype)
        pads = tuple((0, t - s) for s, t in zip(a.shape, shape))
        return jnp.pad(a, pads) if any(p for _, p in pads) else a

    return FFNParams(
        w1=pad_cast(w1, (hp, h2p), compute_dtype),
        b1=pad_cast(b1.reshape(1, -1), (1, h2p), jnp.float32),
        w2=pad_cast(w2, (h2p, dp), compute_dtype),
        b2=pad_cast(b2.reshape(1, -1), (1, dp), jnp.float32),
        hidden=hidden, h2=h2, dec=dec,
    )


# -------------------------------------------------------------------------- forward
def position_wise_feed_forward(x, params: FFNParams, *, tm_max=512, tiling=None):
    """Fused Linear -> ReLU -> Linear.  x: (..., hidden) -> (..., dec)."""
    orig_lead = x.shape[:-1]
    hidden = x.shape[-1]
    assert hidden == params.hidden
    out_dtype = x.dtype
    compute_dtype = params.w1.dtype

    hp, h2p = params.w1.shape
    dp = params.w2.shape[1]
    cbytes = jnp.dtype(compute_dtype).itemsize
    obytes = jnp.dtype(out_dtype).itemsize

    m = int(np.prod(orig_lead)) if orig_lead else 1
    budget = _vmem_budget_bytes()
    if tiling is None:
        mode, tm, tk = _choose_tiling(m, hp, h2p, dp, cbytes, obytes, budget, tm_max)
    else:
        mode, tm, tk = tiling
    mp = _round_up(m, tm)

    # x: cast / pad only when actually needed (skipped in the aligned bf16 case).
    x2d = x.reshape(m, hidden)
    if x2d.dtype != compute_dtype:
        x2d = x2d.astype(compute_dtype)
    if (mp, hp) != (m, hidden):
        x2d = jnp.pad(x2d, ((0, mp - m), (0, hp - hidden)))

    if mode == "resident":
        vmem_est = _resident_vmem_bytes(tm, hp, h2p, dp, cbytes, obytes)
    else:
        vmem_est = _ktile_vmem_bytes(tm, hp, tk, dp, cbytes, obytes)
    vmem_limit = int(min(budget, max(vmem_est + 8 * 1024 * 1024, 32 * 1024 * 1024)))

    cost = pl.CostEstimate(
        flops=2 * mp * (hp * h2p + h2p * dp),
        transcendentals=0,
        bytes_accessed=(mp * hp * cbytes + (hp * h2p + h2p * dp) * cbytes
                        + (h2p + dp) * 4 + mp * dp * obytes),
    )

    def build(single_buffer_weights):
        if mode == "resident":
            w_mode = ({"pipeline_mode": pl.Buffered(1)}
                      if single_buffer_weights and hasattr(pl, "Buffered") else {})
            n_chunks = 2 if tm % 16 == 0 else 1
            kernel = functools.partial(_ffn_resident_kernel, n_chunks=n_chunks)
            grid = (mp // tm,)
            in_specs = [
                pl.BlockSpec((tm, hp), lambda i: (i, 0)),              # x (streamed)
                pl.BlockSpec((hp, h2p), lambda i: (0, 0), **w_mode),   # W1 (resident)
                pl.BlockSpec((1, h2p), lambda i: (0, 0), **w_mode),    # b1
                pl.BlockSpec((h2p, dp), lambda i: (0, 0), **w_mode),   # W2 (resident)
                pl.BlockSpec((1, dp), lambda i: (0, 0), **w_mode),     # b2
            ]
            out_specs = pl.BlockSpec((tm, dp), lambda i: (i, 0))
            scratch = []
            dims = ("parallel",)
        else:
            kernel = _ffn_ktile_kernel
            grid = (mp // tm, h2p // tk)
            in_specs = [
                pl.BlockSpec((tm, hp), lambda i, k: (i, 0)),   # x (resident across k)
                pl.BlockSpec((hp, tk), lambda i, k: (0, k)),   # W1 column tile
                pl.BlockSpec((1, tk), lambda i, k: (0, k)),    # b1 tile
                pl.BlockSpec((tk, dp), lambda i, k: (k, 0)),   # W2 row tile
                pl.BlockSpec((1, dp), lambda i, k: (0, 0)),    # b2
            ]
            out_specs = pl.BlockSpec((tm, dp), lambda i, k: (i, 0))
            scratch = [pltpu.VMEM((tm, dp), jnp.float32)]
            dims = ("parallel", "arbitrary")

        return pl.pallas_call(
            kernel,
            out_shape=jax.ShapeDtypeStruct((mp, dp), out_dtype),
            grid_spec=pltpu.PrefetchScalarGridSpec(
                num_scalar_prefetch=0,
                grid=grid,
                in_specs=in_specs,
                out_specs=out_specs,
                scratch_shapes=scratch,
            ),
            compiler_params=pltpu.CompilerParams(
                dimension_semantics=dims,        # M axis shards across TCs on v7x
                vmem_limit_bytes=vmem_limit,
            ),
            cost_estimate=cost,
        )

    args = (x2d, params.w1, params.b1, params.w2, params.b2)
    try:
        out = build(True)(*args)
    except Exception:
        # pipeline_mode=pl.Buffered(1) not supported on this build -> default buffering.
        out = build(False)(*args)

    if (mp, dp) != (m, params.dec):
        out = out[:m, :params.dec]
    return out.reshape(*orig_lead, params.dec)


# ------------------------------------------------------------------------- test bits
def init_params(key, hidden_size, dec_size, dtype=jnp.float32):
    """Deterministic init mimicking nn.Linear's U(-1/sqrt(fan_in), 1/sqrt(fan_in))."""
    h2 = hidden_size // 2
    k1, k2, k3, k4 = jax.random.split(key, 4)
    lim1 = 1.0 / np.sqrt(hidden_size)
    lim2 = 1.0 / np.sqrt(h2)
    # stored as (in, out) == transposed nn.Linear weight
    w1 = jax.random.uniform(k1, (hidden_size, h2), dtype, -lim1, lim1)
    b1 = jax.random.uniform(k2, (h2,), dtype, -lim1, lim1)
    w2 = jax.random.uniform(k3, (h2, dec_size), dtype, -lim2, lim2)
    b2 = jax.random.uniform(k4, (dec_size,), dtype, -lim2, lim2)
    return w1, b1, w2, b2


def _reference(x, w1, b1, w2, b2, compute_dtype=jnp.bfloat16):
    """Pure-JAX reference with matching bf16 operand quantization (f32 accumulation)."""
    xb = x.astype(compute_dtype)
    h = jnp.dot(xb, w1.astype(compute_dtype),
                preferred_element_type=jnp.float32) + b1.astype(jnp.float32)
    h = jnp.maximum(h, 0.0).astype(compute_dtype)
    return jnp.dot(h, w2.astype(compute_dtype),
                   preferred_element_type=jnp.float32) + b2.astype(jnp.float32)


if __name__ == "__main__":
    key = jax.random.PRNGKey(0)

    # --- Small shape consistent with the module (resident-weight path). ---
    hidden_size, dec_size, batch, seq = 32, 16, 2, 8
    kx, kp, key = jax.random.split(key, 3)
    x = jax.random.normal(kx, (batch, seq, hidden_size), jnp.float32)
    w1, b1, w2, b2 = init_params(kp, hidden_size, dec_size)
    params = prepare_ffn_params(w1, b1, w2, b2)          # one-time pad + cast

    out = jax.block_until_ready(position_wise_feed_forward(x, params))
    ref = _reference(x, w1, b1, w2, b2)
    np.testing.assert_allclose(np.asarray(out), np.asarray(ref), rtol=2e-3, atol=2e-3)
    assert out.shape == (batch, seq, dec_size)

    # --- Larger shape: resident path with multiple row tiles + forced K-tiled path. ---
    hidden2, dec2, batch2, seq2 = 512, 64, 4, 32
    kx2, kp2 = jax.random.split(key)
    x_big = jax.random.normal(kx2, (batch2, seq2, hidden2), jnp.float32)
    raw2 = init_params(kp2, hidden2, dec2)
    params2 = prepare_ffn_params(*raw2)

    out_res = jax.block_until_ready(position_wise_feed_forward(x_big, params2))
    out_kt = jax.block_until_ready(
        position_wise_feed_forward(x_big, params2, tiling=("ktile", 64, 128)))
    ref2 = _reference(x_big, *raw2)
    np.testing.assert_allclose(np.asarray(out_res), np.asarray(ref2), rtol=5e-3, atol=5e-3)
    np.testing.assert_allclose(np.asarray(out_kt), np.asarray(ref2), rtol=5e-3, atol=5e-3)
    assert out_res.shape == (batch2, seq2, dec2)

    print("KERNEL_OK")
</pallas_src>

<mosaic_0001>
module attributes {stable_mosaic.version = 11 : i64} {
  func.func @_ffn_resident_kernel(%arg0: i32, %arg1: memref<16x128xbf16, #tpu.memory_space<vmem>>, %arg2: memref<128x128xbf16, #tpu.memory_space<vmem>>, %arg3: memref<1x128xf32, #tpu.memory_space<vmem>>, %arg4: memref<128x128xbf16, #tpu.memory_space<vmem>>, %arg5: memref<1x128xf32, #tpu.memory_space<vmem>>, %arg6: memref<16x128xf32, #tpu.memory_space<vmem>>) attributes {dimension_semantics = [#tpu.dimension_semantics<parallel>], iteration_bounds = array<i64: 1>, scalar_prefetch = 0 : i64, scratch_operands = 0 : i64, tpu.core_type = #tpu.core_type<tc>, window_params = [{transform_indices = @transform_0, window_bounds = array<i64: 16, 128>}, {pipeline_mode = #tpu.pipeline_mode<synchronous>, transform_indices = @transform_1, window_bounds = array<i64: 128, 128>}, {pipeline_mode = #tpu.pipeline_mode<synchronous>, transform_indices = @transform_2, window_bounds = array<i64: 1, 128>}, {pipeline_mode = #tpu.pipeline_mode<synchronous>, transform_indices = @transform_3, window_bounds = array<i64: 128, 128>}, {pipeline_mode = #tpu.pipeline_mode<synchronous>, transform_indices = @transform_4, window_bounds = array<i64: 1, 128>}, {transform_indices = @transform_5, window_bounds = array<i64: 16, 128>}]} {
    %c0 = arith.constant 0 : index
    %c0_0 = arith.constant 0 : index
    %0 = vector.load %arg2[%c0, %c0_0] : memref<128x128xbf16, #tpu.memory_space<vmem>>, vector<128x128xbf16>
    %c0_1 = arith.constant 0 : index
    %c0_2 = arith.constant 0 : index
    %1 = vector.load %arg4[%c0_1, %c0_2] : memref<128x128xbf16, #tpu.memory_space<vmem>>, vector<128x128xbf16>
    %c0_3 = arith.constant 0 : index
    %c0_4 = arith.constant 0 : index
    %2 = vector.load %arg3[%c0_3, %c0_4] : memref<1x128xf32, #tpu.memory_space<vmem>>, vector<1x128xf32>
    %c0_5 = arith.constant 0 : index
    %c0_6 = arith.constant 0 : index
    %3 = vector.load %arg5[%c0_5, %c0_6] : memref<1x128xf32, #tpu.memory_space<vmem>>, vector<1x128xf32>
    %c0_7 = arith.constant 0 : index
    %c0_8 = arith.constant 0 : index
    %4 = vector.load %arg1[%c0_7, %c0_8] : memref<16x128xbf16, #tpu.memory_space<vmem>>, vector<8x128xbf16>
    %cst = arith.constant dense<0.000000e+00> : vector<8x128xf32>
    %5 = tpu.matmul %4, %0, %cst {dimension_numbers = #tpu.dot_dimension_numbers<[1], [0], [0], [1], [0, 0, 1, 1], [], []>} : vector<8x128xbf16>, vector<128x128xbf16>, vector<8x128xf32> -> vector<8x128xf32>
    %6 = vector.broadcast %2 : vector<1x128xf32> to vector<8x128xf32>
    %7 = arith.addf %5, %6 : vector<8x128xf32>
    %cst_9 = arith.constant 0.000000e+00 : f32
    %8 = vector.broadcast %cst_9 : f32 to vector<8x128xf32>
    %9 = arith.maximumf %7, %8 : vector<8x128xf32>
    %10 = arith.truncf %9 : vector<8x128xf32> to vector<8x128xbf16>
    %cst_10 = arith.constant dense<0.000000e+00> : vector<8x128xf32>
    %11 = tpu.matmul %10, %1, %cst_10 {dimension_numbers = #tpu.dot_dimension_numbers<[1], [0], [0], [1], [0, 0, 1, 1], [], []>} : vector<8x128xbf16>, vector<128x128xbf16>, vector<8x128xf32> -> vector<8x128xf32>
    %12 = vector.broadcast %3 : vector<1x128xf32> to vector<8x128xf32>
    %13 = arith.addf %11, %12 : vector<8x128xf32>
    %c0_11 = arith.constant 0 : index
    %c0_12 = arith.constant 0 : index
    %14 = vector.load %arg6[%c0_11, %c0_12] : memref<16x128xf32, #tpu.memory_space<vmem>>, vector<8x128xf32>
    tpu.vector_store %arg6[%c0_11, %c0_12], %13 {strides = array<i32>} : memref<16x128xf32, #tpu.memory_space<vmem>>, vector<8x128xf32>,
    %c8 = arith.constant 8 : index
    %c0_13 = arith.constant 0 : index
    %15 = vector.load %arg1[%c8, %c0_13] : memref<16x128xbf16, #tpu.memory_space<vmem>>, vector<8x128xbf16>
    %cst_14 = arith.constant dense<0.000000e+00> : vector<8x128xf32>
    %16 = tpu.matmul %15, %0, %cst_14 {dimension_numbers = #tpu.dot_dimension_numbers<[1], [0], [0], [1], [0, 0, 1, 1], [], []>} : vector<8x128xbf16>, vector<128x128xbf16>, vector<8x128xf32> -> vector<8x128xf32>
    %17 = vector.broadcast %2 : vector<1x128xf32> to vector<8x128xf32>
    %18 = arith.addf %16, %17 : vector<8x128xf32>
    %cst_15 = arith.constant 0.000000e+00 : f32
    %19 = vector.broadcast %cst_15 : f32 to vector<8x128xf32>
    %20 = arith.maximumf %18, %19 : vector<8x128xf32>
    %21 = arith.truncf %20 : vector<8x128xf32> to vector<8x128xbf16>
    %cst_16 = arith.constant dense<0.000000e+00> : vector<8x128xf32>
    %22 = tpu.matmul %21, %1, %cst_16 {dimension_numbers = #tpu.dot_dimension_numbers<[1], [0], [0], [1], [0, 0, 1, 1], [], []>} : vector<8x128xbf16>, vector<128x128xbf16>, vector<8x128xf32> -> vector<8x128xf32>
    %23 = vector.broadcast %3 : vector<1x128xf32> to vector<8x128xf32>
    %24 = arith.addf %22, %23 : vector<8x128xf32>
    %c8_17 = arith.constant 8 : index
    %c0_18 = arith.constant 0 : index
    %25 = vector.load %arg6[%c8_17, %c0_18] : memref<16x128xf32, #tpu.memory_space<vmem>>, vector<8x128xf32>
    tpu.vector_store %arg6[%c8_17, %c0_18], %24 {strides = array<i32>} : memref<16x128xf32, #tpu.memory_space<vmem>>, vector<8x128xf32>,
    return
  }
  func.func @transform_0(%arg0: i32) -> (i32, i32) {
    %c0_i32 = arith.constant 0 : i32
    %c0_i32_0 = arith.constant 0 : i32
    return %arg0, %c0_i32 : i32, i32
  }
  func.func @transform_1(%arg0: i32) -> (i32, i32) {
    %c0_i32 = arith.constant 0 : i32
    %c0_i32_0 = arith.constant 0 : i32
    %c0_i32_1 = arith.constant 0 : i32
    return %c0_i32, %c0_i32_0 : i32, i32
  }
  func.func @transform_2(%arg0: i32) -> (i32, i32) {
    %c0_i32 = arith.constant 0 : i32
    %c0_i32_0 = arith.constant 0 : i32
    %c0_i32_1 = arith.constant 0 : i32
    return %c0_i32, %c0_i32_0 : i32, i32
  }
  func.func @transform_3(%arg0: i32) -> (i32, i32) {
    %c0_i32 = arith.constant 0 : i32
    %c0_i32_0 = arith.constant 0 : i32
    %c0_i32_1 = arith.constant 0 : i32
    return %c0_i32, %c0_i32_0 : i32, i32
  }
  func.func @transform_4(%arg0: i32) -> (i32, i32) {
    %c0_i32 = arith.constant 0 : i32
    %c0_i32_0 = arith.constant 0 : i32
    %c0_i32_1 = arith.constant 0 : i32
    return %c0_i32, %c0_i32_0 : i32, i32
  }
  func.func @transform_5(%arg0: i32) -> (i32, i32) {
    %c0_i32 = arith.constant 0 : i32
    %c0_i32_0 = arith.constant 0 : i32
    return %arg0, %c0_i32 : i32, i32
  }
}

module attributes {stable_mosaic.version = 11 : i64} {
  func.func @_ffn_resident_kernel(%arg0: i32, %arg1: memref<16x128xbf16, #tpu.memory_space<vmem>>, %arg2: memref<128x128xbf16, #tpu.memory_space<vmem>>, %arg3: memref<1x128xf32, #tpu.memory_space<vmem>>, %arg4: memref<128x128xbf16, #tpu.memory_space<vmem>>, %arg5: memref<1x128xf32, #tpu.memory_space<vmem>>, %arg6: memref<16x128xf32, #tpu.memory_space<vmem>>) attributes {dimension_semantics = [#tpu.dimension_semantics<parallel>], iteration_bounds = array<i64: 1>, scalar_prefetch = 0 : i64, scratch_operands = 0 : i64, tpu.core_type = #tpu.core_type<tc>, window_params = [{transform_indices = @transform_0, window_bounds = array<i64: 16, 128>}, {pipeline_mode = #tpu.pipeline_mode<synchronous>, transform_indices = @transform_1, window_bounds = array<i64: 128, 128>}, {pipeline_mode = #tpu.pipeline_mode<synchronous>, transform_indices = @transform_2, window_bounds = array<i64: 1, 128>}, {pipeline_mode = #tpu.pipeline_mode<synchronous>, transform_indices = @transform_3, window_bounds = array<i64: 128, 128>}, {pipeline_mode = #tpu.pipeline_mode<synchronous>, transform_indices = @transform_4, window_bounds = array<i64: 1, 128>}, {transform_indices = @transform_5, window_bounds = array<i64: 16, 128>}]} {
    %c0 = arith.constant 0 : index
    %c0_0 = arith.constant 0 : index
    %0 = vector.load %arg2[%c0, %c0_0] : memref<128x128xbf16, #tpu.memory_space<vmem>>, vector<128x128xbf16>
    %c0_1 = arith.constant 0 : index
    %c0_2 = arith.constant 0 : index
    %1 = vector.load %arg4[%c0_1, %c0_2] : memref<128x128xbf16, #tpu.memory_space<vmem>>, vector<128x128xbf16>
    %c0_3 = arith.constant 0 : index
    %c0_4 = arith.constant 0 : index
    %2 = vector.load %arg3[%c0_3, %c0_4] : memref<1x128xf32, #tpu.memory_space<vmem>>, vector<1x128xf32>
    %c0_5 = arith.constant 0 : index
    %c0_6 = arith.constant 0 : index
    %3 = vector.load %arg5[%c0_5, %c0_6] : memref<1x128xf32, #tpu.memory_space<vmem>>, vector<1x128xf32>
    %c0_7 = arith.constant 0 : index
    %c0_8 = arith.constant 0 : index
    %4 = vector.load %arg1[%c0_7, %c0_8] : memref<16x128xbf16, #tpu.memory_space<vmem>>, vector<8x128xbf16>
    %cst = arith.constant dense<0.000000e+00> : vector<8x128xf32>
    %5 = tpu.matmul %4, %0, %cst {dimension_numbers = #tpu.dot_dimension_numbers<[1], [0], [0], [1], [0, 0, 1, 1], [], []>} : vector<8x128xbf16>, vector<128x128xbf16>, vector<8x128xf32> -> vector<8x128xf32>
    %6 = vector.broadcast %2 : vector<1x128xf32> to vector<8x128xf32>
    %7 = arith.addf %5, %6 : vector<8x128xf32>
    %cst_9 = arith.constant 0.000000e+00 : f32
    %8 = vector.broadcast %cst_9 : f32 to vector<8x128xf32>
    %9 = arith.maximumf %7, %8 : vector<8x128xf32>
    %10 = arith.truncf %9 : vector<8x128xf32> to vector<8x128xbf16>
    %cst_10 = arith.constant dense<0.000000e+00> : vector<8x128xf32>
    %11 = tpu.matmul %10, %1, %cst_10 {dimension_numbers = #tpu.dot_dimension_numbers<[1], [0], [0], [1], [0, 0, 1, 1], [], []>} : vector<8x128xbf16>, vector<128x128xbf16>, vector<8x128xf32> -> vector<8x128xf32>
    %12 = vector.broadcast %3 : vector<1x128xf32> to vector<8x128xf32>
    %13 = arith.addf %11, %12 : vector<8x128xf32>
    %c0_11 = arith.constant 0 : index
    %c0_12 = arith.constant 0 : index
    %14 = vector.load %arg6[%c0_11, %c0_12] : memref<16x128xf32, #tpu.memory_space<vmem>>, vector<8x128xf32>
    tpu.vector_store %arg6[%c0_11, %c0_12], %13 {strides = array<i32>} : memref<16x128xf32, #tpu.memory_space<vmem>>, vector<8x128xf32>,
    %c8 = arith.constant 8 : index
    %c0_13 = arith.constant 0 : index
    %15 = vector.load %arg1[%c8, %c0_13] : memref<16x128xbf16, #tpu.memory_space<vmem>>, vector<8x128xbf16>
    %cst_14 = arith.constant dense<0.000000e+00> : vector<8x128xf32>
    %16 = tpu.matmul %15, %0, %cst_14 {dimension_numbers = #tpu.dot_dimension_numbers<[1], [0], [0], [1], [0, 0, 1, 1], [], []>} : vector<8x128xbf16>, vector<128x128xbf16>, vector<8x128xf32> -> vector<8x128xf32>
    %17 = vector.broadcast %2 : vector<1x128xf32> to vector<8x128xf32>
    %18 = arith.addf %16, %17 : vector<8x128xf32>
    %cst_15 = arith.constant 0.000000e+00 : f32
    %19 = vector.broadcast %cst_15 : f32 to vector<8x128xf32>
    %20 = arith.maximumf %18, %19 : vector<8x128xf32>
    %21 = arith.truncf %20 : vector<8x128xf32> to vector<8x128xbf16>
    %cst_16 = arith.constant dense<0.000000e+00> : vector<8x128xf32>
    %22 = tpu.matmul %21, %1, %cst_16 {dimension_numbers = #tpu.dot_dimension_numbers<[1], [0], [0], [1], [0, 0, 1, 1], [], []>} : vector<8x128xbf16>, vector<128x128xbf16>, vector<8x128xf32> -> vector<8x128xf32>
    %23 = vector.broadcast %3 : vector<1x128xf32> to vector<8x128xf32>
    %24 = arith.addf %22, %23 : vector<8x128xf32>
    %c8_17 = arith.constant 8 : index
    %c0_18 = arith.constant 0 : index
    %25 = vector.load %arg6[%c8_17, %c0_18] : memref<16x128xf32, #tpu.memory_space<vmem>>, vector<8x128xf32>
    tpu.vector_store %arg6[%c8_17, %c0_18], %24 {strides = array<i32>} : memref<16x128xf32, #tpu.memory_space<vmem>>, vector<8x128xf32>,
    return
  }
  func.func @transform_0(%arg0: i32) -> (i32, i32) {
    %c0_i32 = arith.constant 0 : i32
    %c0_i32_0 = arith.constant 0 : i32
    return %arg0, %c0_i32 : i32, i32
  }
  func.func @transform_1(%arg0: i32) -> (i32, i32) {
    %c0_i32 = arith.constant 0 : i32
    %c0_i32_0 = arith.constant 0 : i32
    %c0_i32_1 = arith.constant 0 : i32
    return %c0_i32, %c0_i32_0 : i32, i32
  }
  func.func @transform_2(%arg0: i32) -> (i32, i32) {
    %c0_i32 = arith.constant 0 : i32
    %c0_i32_0 = arith.constant 0 : i32
    %c0_i32_1 = arith.constant 0 : i32
    return %c0_i32, %c0_i32_0 : i32, i32
  }
  func.func @transform_3(%arg0: i32) -> (i32, i32) {
    %c0_i32 = arith.constant 0 : i32
    %c0_i32_0 = arith.constant 0 : i32
    %c0_i32_1 = arith.constant 0 : i32
    return %c0_i32, %c0_i32_0 : i32, i32
  }
  func.func @transform_4(%arg0: i32) -> (i32, i32) {
    %c0_i32 = arith.constant 0 : i32
    %c0_i32_0 = arith.constant 0 : i32
    %c0_i32_1 = arith.constant 0 : i32
    return %c0_i32, %c0_i32_0 : i32, i32
  }
  func.func @transform_5(%arg0: i32) -> (i32, i32) {
    %c0_i32 = arith.constant 0 : i32
    %c0_i32_0 = arith.constant 0 : i32
    return %arg0, %c0_i32 : i32, i32
  }
}

</mosaic_0001>

<llo_original>
// kernel: tpu_custom_call.1
$region0: #{tpu_custom_call.1}
  #allocation0 [shape = 'u32[]', space=smem, size = 0x4, offset = 0x4, fixed_abs, tag = 'smem constant byte address 0x4 - core index']
  #allocation1 [shape = 'u32[72,128]{1,0:T(1,128)}', space=vmem, size = 0x9000, scoped, tag = 'internal scratch']
  %s0 = inlined_call_operand.hbm [shape: bf16[16,128], index: 0, kind: input, shape index: {}]
  %s1 = inlined_call_operand.hbm [shape: bf16[128,128], index: 1, kind: input, shape index: {}]
  %s2 = inlined_call_operand.vmem [shape: f32[1,128], index: 2, kind: input, shape index: {}]
  %s3 = inlined_call_operand.hbm [shape: bf16[128,128], index: 3, kind: input, shape index: {}]
  %s4 = inlined_call_operand.vmem [shape: f32[1,128], index: 4, kind: input, shape index: {}]
  %s5 = inlined_call_operand.hbm [shape: f32[16,128], index: 5, kind: output, shape index: {}]
  %s6 = sld [smem:[#allocation0]]
  $region42: #{tpu_custom_call.1} parent=0
    _
  %s8 = ssub.s32 1, %s6
  %s9 = scalar_select 0, %s8, %s6
  $region1: #{tpu_custom_call.1} parent=0
    #allocation2 [shape = 'u8[4096]{0}', space=vmem, size = 0x1000, scoped, tag = 'input window, operand 0, single buffered']
    #allocation3 [shape = 's32[1]{0}', space=sflag, size = 0x4, scoped, tag = 'scoped memory for tpu_custom_call.1']
    #allocation4 [shape = 's32[1]{0}', space=sflag, size = 0x4, scoped, tag = 'scoped memory for tpu_custom_call.1']
    #allocation5 [shape = 'u8[32768]{0}', space=vmem, size = 0x8000, scoped, tag = 'input window, operand 1, single buffered']
    #allocation6 [shape = 's32[1]{0}', space=sflag, size = 0x4, scoped, tag = 'scoped memory for tpu_custom_call.1']
    #allocation7 [shape = 'u8[32768]{0}', space=vmem, size = 0x8000, scoped, tag = 'input window, operand 3, single buffered']
    #allocation8 [shape = 'u8[8192]{0}', space=vmem, size = 0x2000, scoped, tag = 'output window, operand 0, single buffered']
    %10 = vsyncpa [#allocation3], 0
    %11 = vsyncpa [#allocation6], 0
    %12 = vsyncpa [#allocation4], 0
    // Predicated region
    $region2: #{tpu_custom_call.1} parent=1 // pred_check
      _
    $region3: #{tpu_custom_call.1} parent=1 // pred_check_branch
      %14 = sbr.rel (0) target = $region5
    $region4: #{tpu_custom_call.1} parent=1 // pred_region
      %16 = vsyncadd [#allocation3], 0
      %s17 = sshll.u32 %s0, 4
      %s18 = int_to_ptr.hbm [resolvable:$true] %s17
      %s19 = sshll.u32 [#allocation2], 4
      %s20 = int_to_ptr.vmem [resolvable:$true] %s19
      %25 = dma.hbm_to_vmem [thread:$0]  %s18, 128, %s20, [#allocation3], 64, 64, 4
    $region5: #{tpu_custom_call.1} parent=1 // pred_fallthru
      _
    // Predicated region
    $region6: #{tpu_custom_call.1} parent=1 // pred_check
      _
    $region7: #{tpu_custom_call.1} parent=1 // pred_check_branch
      %27 = sbr.rel (0) target = $region9
    $region8: #{tpu_custom_call.1} parent=1 // pred_region
      %29 = vsyncadd [#allocation6], 0
      %s30 = sshll.u32 %s1, 4
      %s31 = int_to_ptr.hbm [resolvable:$true] %s30
      %s32 = sshll.u32 [#allocation5], 4
      %s33 = int_to_ptr.vmem [resolvable:$true] %s32
      %38 = dma.hbm_to_vmem [thread:$0]  %s31, 1024, %s33, [#allocation6], 64, 64, 4
    $region9: #{tpu_custom_call.1} parent=1 // pred_fallthru
      _
    // Predicated region
    $region10: #{tpu_custom_call.1} parent=1 // pred_check
      _
    $region11: #{tpu_custom_call.1} parent=1 // pred_check_branch
      %40 = sbr.rel (0) target = $region13
    $region12: #{tpu_custom_call.1} parent=1 // pred_region
      _
    $region13: #{tpu_custom_call.1} parent=1 // pred_fallthru
      _
    // Predicated region
    $region14: #{tpu_custom_call.1} parent=1 // pred_check
      _
    $region15: #{tpu_custom_call.1} parent=1 // pred_check_branch
      %42 = sbr.rel (0) target = $region17
    $region16: #{tpu_custom_call.1} parent=1 // pred_region
      %44 = vsyncadd [#allocation6], 0
      %s45 = sshll.u32 %s3, 4
      %s46 = int_to_ptr.hbm [resolvable:$true] %s45
      %s47 = sshll.u32 [#allocation7], 4
      %s48 = int_to_ptr.vmem [resolvable:$true] %s47
      %53 = dma.hbm_to_vmem [thread:$0]  %s46, 1024, %s48, [#allocation6], 64, 64, 4
    $region17: #{tpu_custom_call.1} parent=1 // pred_fallthru
      _
    // Predicated region
    $region18: #{tpu_custom_call.1} parent=1 // pred_check
      _
    $region19: #{tpu_custom_call.1} parent=1 // pred_check_branch
      %55 = sbr.rel (0) target = $region21
    $region20: #{tpu_custom_call.1} parent=1 // pred_region
      _
    $region21: #{tpu_custom_call.1} parent=1 // pred_fallthru
      _
    // Predicated region
    $region22: #{tpu_custom_call.1} parent=1 // pred_check
      _
    $region23: #{tpu_custom_call.1} parent=1 // pred_check_branch
      %57 = sbr.rel (0) target = $region25
    $region24: #{tpu_custom_call.1} parent=1 // pred_region
      %59 = dma.done [#allocation3], 128
    $region25: #{tpu_custom_call.1} parent=1 // pred_fallthru
      _
    // Predicated region
    $region26: #{tpu_custom_call.1} parent=1 // pred_check
      _
    $region27: #{tpu_custom_call.1} parent=1 // pred_check_branch
      %61 = sbr.rel (0) target = $region29
    $region28: #{tpu_custom_call.1} parent=1 // pred_region
      %63 = dma.done [#allocation6], 1024
    $region29: #{tpu_custom_call.1} parent=1 // pred_fallthru
      _
    // Predicated region
    $region30: #{tpu_custom_call.1} parent=1 // pred_check
      _
    $region31: #{tpu_custom_call.1} parent=1 // pred_check_branch
      %65 = sbr.rel (0) target = $region33
    $region32: #{tpu_custom_call.1} parent=1 // pred_region
      %67 = dma.done [#allocation6], 1024
    $region33: #{tpu_custom_call.1} parent=1 // pred_fallthru
      _
    %v68 = vld [vmem:[#allocation5] sm:$0xf]
    %v69 = vld [vmem:[#allocation5 + $0x4] sm:$0xf]
    %v70 = vld [vmem:[#allocation5 + $0x8] sm:$0xf]
    %v71 = vld [vmem:[#allocation5 + $0xc] sm:$0xf]
    %v72 = vld [vmem:[#allocation5 + $0x10] sm:$0xf]
    %v73 = vld [vmem:[#allocation5 + $0x14] sm:$0xf]
    %v74 = vld [vmem:[#allocation5 + $0x18] sm:$0xf]
    %v75 = vld [vmem:[#allocation5 + $0x1c] sm:$0xf]
    %v76 = vld [vmem:[#allocation5 + $0x20] sm:$0xf]
    %v77 = vld [vmem:[#allocation5 + $0x24] sm:$0xf]
    %v78 = vld [vmem:[#allocation5 + $0x28] sm:$0xf]
    %v79 = vld [vmem:[#allocation5 + $0x2c] sm:$0xf]
    %v80 = vld [vmem:[#allocation5 + $0x30] sm:$0xf]
    %v81 = vld [vmem:[#allocation5 + $0x34] sm:$0xf]
    %v82 = vld [vmem:[#allocation5 + $0x38] sm:$0xf]
    %v83 = vld [vmem:[#allocation5 + $0x3c] sm:$0xf]
    %v84 = vld [vmem:[#allocation7] sm:$0xf]
    %v85 = vld [vmem:[#allocation7 + $0x4] sm:$0xf]
    %v86 = vld [vmem:[#allocation7 + $0x8] sm:$0xf]
    %v87 = vld [vmem:[#allocation7 + $0xc] sm:$0xf]
    %v88 = vld [vmem:[#allocation7 + $0x10] sm:$0xf]
    %v89 = vld [vmem:[#allocation7 + $0x14] sm:$0xf]
    %v90 = vld [vmem:[#allocation7 + $0x18] sm:$0xf]
    %v91 = vld [vmem:[#allocation7 + $0x1c] sm:$0xf]
    %v92 = vld [vmem:[#allocation7 + $0x20] sm:$0xf]
    %v93 = vld [vmem:[#allocation7 + $0x24] sm:$0xf]
    %v94 = vld [vmem:[#allocation7 + $0x28] sm:$0xf]
    %v95 = vld [vmem:[#allocation7 + $0x2c] sm:$0xf]
    %v96 = vld [vmem:[#allocation7 + $0x30] sm:$0xf]
    %v97 = vld [vmem:[#allocation7 + $0x34] sm:$0xf]
    %v98 = vld [vmem:[#allocation7 + $0x38] sm:$0xf]
    %v99 = vld [vmem:[#allocation7 + $0x3c] sm:$0xf]
    %v100 = vld [vmem:[%s2] sm:$0x1]
    %v101 = vld [vmem:[%s4] sm:$0x1]
    %v102 = vld [vmem:[#allocation2] sm:$0xf]
    %v104 = vperm.slane %v100, 0
    %v122 = vunpack.c.l.b16 %v68
    %v123 = vunpack.c.l.b16 %v69
    %v124 = vunpack.c.l.b16 %v70
    %v125 = vunpack.c.l.b16 %v71
    %v126 = vunpack.c.l.b16 %v72
    %v127 = vunpack.c.l.b16 %v73
    %v128 = vunpack.c.l.b16 %v74
    %v129 = vunpack.c.l.b16 %v75
    %v130 = vunpack.c.l.b16 %v76
    %v131 = vunpack.c.l.b16 %v77
    %v132 = vunpack.c.l.b16 %v78
    %v133 = vunpack.c.l.b16 %v79
    %v134 = vunpack.c.l.b16 %v80
    %v135 = vunpack.c.l.b16 %v81
    %v136 = vunpack.c.l.b16 %v82
    %v137 = vunpack.c.l.b16 %v83
    %v138 = vpack.c.b16 %v123, %v122
    %v139 = vpack.c.b16 %v125, %v124
    %v140 = vpack.c.b16 %v127, %v126
    %v141 = vpack.c.b16 %v129, %v128
    %v142 = vpack.c.b16 %v131, %v130
    %v143 = vpack.c.b16 %v133, %v132
    %v144 = vpack.c.b16 %v135, %v134
    %v145 = vpack.c.b16 %v137, %v136
    %154 = vmatpush.bf16.msra.mxu0 %v145
    %155 = vmatpush.bf16.msra.mxu0 %v144
    %156 = vmatpush.bf16.msra.mxu0 %v143
    %157 = vmatpush.bf16.msra.mxu0 %v142
    %158 = vmatpush.bf16.msra.mxu0 %v141
    %159 = vmatpush.bf16.msra.mxu0 %v140
    %160 = vmatpush.bf16.msra.mxu0 %v139
    %161 = vmatpush.bf16.msra.mxu0 %v138
    %162 = vmatmul.bf16.gmra.mxu0 %v102
    %v163 = vpop.f32.mrf.mxu0
    %v164 = vadd.f32 %v104, %v163
    %v165 = vpop.f32.mrf.mxu0
    %166 = vdwg.mxu0
    %v167 = vmax.f32 %v164, 0.0
    %v168 = vpack.c.bf16 %v167, %v167
    %v170 = vperm.slane %v101, 0
    %v188 = vunpack.c.l.b16 %v84
    %v189 = vunpack.c.l.b16 %v85
    %v190 = vunpack.c.l.b16 %v86
    %v191 = vunpack.c.l.b16 %v87
    %v192 = vunpack.c.l.b16 %v88
    %v193 = vunpack.c.l.b16 %v89
    %v194 = vunpack.c.l.b16 %v90
    %v195 = vunpack.c.l.b16 %v91
    %v196 = vunpack.c.l.b16 %v92
    %v197 = vunpack.c.l.b16 %v93
    %v198 = vunpack.c.l.b16 %v94
    %v199 = vunpack.c.l.b16 %v95
    %v200 = vunpack.c.l.b16 %v96
    %v201 = vunpack.c.l.b16 %v97
    %v202 = vunpack.c.l.b16 %v98
    %v203 = vunpack.c.l.b16 %v99
    %v204 = vpack.c.b16 %v189, %v188
    %v205 = vpack.c.b16 %v191, %v190
    %v206 = vpack.c.b16 %v193, %v192
    %v207 = vpack.c.b16 %v195, %v194
    %v208 = vpack.c.b16 %v197, %v196
    %v209 = vpack.c.b16 %v199, %v198
    %v210 = vpack.c.b16 %v201, %v200
    %v211 = vpack.c.b16 %v203, %v202
    %220 = vmatpush.bf16.msra.mxu0 %v211
    %221 = vmatpush.bf16.msra.mxu0 %v210
    %222 = vmatpush.bf16.msra.mxu0 %v209
    %223 = vmatpush.bf16.msra.mxu0 %v208
    %224 = vmatpush.bf16.msra.mxu0 %v207
    %225 = vmatpush.bf16.msra.mxu0 %v206
    %226 = vmatpush.bf16.msra.mxu0 %v205
    %227 = vmatpush.bf16.msra.mxu0 %v204
    %228 = vmatmul.bf16.gmra.mxu0 %v168
    %v229 = vpop.f32.mrf.mxu0
    %v230 = vadd.f32 %v170, %v229
    %v231 = vpop.f32.mrf.mxu0
    %232 = vdwg.mxu0
    %233 = vst [vmem:[#allocation8] sm:$0xff] %v230
    %v234 = vld [vmem:[#allocation2 + $0x4] sm:$0xf]
    %235 = vmatpush.bf16.msra.mxu0 %v145
    %236 = vmatpush.bf16.msra.mxu0 %v144
    %237 = vmatpush.bf16.msra.mxu0 %v143
    %238 = vmatpush.bf16.msra.mxu0 %v142
    %239 = vmatpush.bf16.msra.mxu0 %v141
    %240 = vmatpush.bf16.msra.mxu0 %v140
    %241 = vmatpush.bf16.msra.mxu0 %v139
    %242 = vmatpush.bf16.msra.mxu0 %v138
    %243 = vmatmul.bf16.gmra.mxu0 %v234
    %v244 = vpop.f32.mrf.mxu0
    %v245 = vadd.f32 %v104, %v244
    %v246 = vpop.f32.mrf.mxu0
    %247 = vdwg.mxu0
    %v248 = vmax.f32 %v245, 0.0
    %v249 = vpack.c.bf16 %v248, %v248
    %250 = vmatpush.bf16.msra.mxu0 %v211
    %251 = vmatpush.bf16.msra.mxu0 %v210
    %252 = vmatpush.bf16.msra.mxu0 %v209
    %253 = vmatpush.bf16.msra.mxu0 %v208
    %254 = vmatpush.bf16.msra.mxu0 %v207
    %255 = vmatpush.bf16.msra.mxu0 %v206
    %256 = vmatpush.bf16.msra.mxu0 %v205
    %257 = vmatpush.bf16.msra.mxu0 %v204
    %258 = vmatmul.bf16.gmra.mxu0 %v249
    %v259 = vpop.f32.mrf.mxu0
    %v260 = vadd.f32 %v170, %v259
    %v261 = vpop.f32.mrf.mxu0
    %262 = vdwg.mxu0
    %263 = vst [vmem:[#allocation8 + $0x8] sm:$0xff] %v260
    // Predicated region
    $region34: #{tpu_custom_call.1} parent=1 // pred_check
      _
    $region35: #{tpu_custom_call.1} parent=1 // pred_check_branch
      %265 = sbr.rel (0) target = $region37
    $region36: #{tpu_custom_call.1} parent=1 // pred_region
      %267 = vsyncadd [#allocation4], 0
      %s268 = sshll.u32 [#allocation8], 4
      %s269 = int_to_ptr.vmem [resolvable:$true] %s268
      %s270 = sshll.u32 %s5, 4
      %s271 = int_to_ptr.hbm [resolvable:$true] %s270
      %276 = dma.vmem_to_hbm [thread:$0]  %s269, 256, %s271, [#allocation4], 128, 128, 8
    $region37: #{tpu_custom_call.1} parent=1 // pred_fallthru
      _
    // Predicated region
    $region38: #{tpu_custom_call.1} parent=1 // pred_check
      _
    $region39: #{tpu_custom_call.1} parent=1 // pred_check_branch
      %278 = sbr.rel (0) target = $region41
    $region40: #{tpu_custom_call.1} parent=1 // pred_region
      %280 = dma.done [#allocation4], 256
    $region41: #{tpu_custom_call.1} parent=1 // pred_fallthru
      _
    %281 = vsyncpa [#allocation3], 1
    %282 = vsyncpa [#allocation6], 1
    %283 = vsyncpa [#allocation4], 1

// kernel: tpu_custom_call.1
$region0: #{tpu_custom_call.1}
  #allocation0 [shape = 'u32[]', space=smem, size = 0x4, offset = 0x4, fixed_abs, tag = 'smem constant byte address 0x4 - core index']
  #allocation1 [shape = 'u32[72,128]{1,0:T(1,128)}', space=vmem, size = 0x9000, scoped, tag = 'internal scratch']
  %s0 = inlined_call_operand.hbm [shape: bf16[16,128], index: 0, kind: input, shape index: {}]
  %s1 = inlined_call_operand.hbm [shape: bf16[128,128], index: 1, kind: input, shape index: {}]
  %s2 = inlined_call_operand.vmem [shape: f32[1,128], index: 2, kind: input, shape index: {}]
  %s3 = inlined_call_operand.hbm [shape: bf16[128,128], index: 3, kind: input, shape index: {}]
  %s4 = inlined_call_operand.vmem [shape: f32[1,128], index: 4, kind: input, shape index: {}]
  %s5 = inlined_call_operand.hbm [shape: f32[16,128], index: 5, kind: output, shape index: {}]
  %s6 = sld [smem:[#allocation0]]
  $region42: #{tpu_custom_call.1} parent=0
    _
  %s8 = ssub.s32 1, %s6
  %s9 = scalar_select 0, %s8, %s6
  $region1: #{tpu_custom_call.1} parent=0
    #allocation2 [shape = 'u8[4096]{0}', space=vmem, size = 0x1000, scoped, tag = 'input window, operand 0, single buffered']
    #allocation3 [shape = 's32[1]{0}', space=sflag, size = 0x4, scoped, tag = 'scoped memory for tpu_custom_call.1']
    #allocation4 [shape = 's32[1]{0}', space=sflag, size = 0x4, scoped, tag = 'scoped memory for tpu_custom_call.1']
    #allocation5 [shape = 'u8[32768]{0}', space=vmem, size = 0x8000, scoped, tag = 'input window, operand 1, single buffered']
    #allocation6 [shape = 's32[1]{0}', space=sflag, size = 0x4, scoped, tag = 'scoped memory for tpu_custom_call.1']
    #allocation7 [shape = 'u8[32768]{0}', space=vmem, size = 0x8000, scoped, tag = 'input window, operand 3, single buffered']
    #allocation8 [shape = 'u8[8192]{0}', space=vmem, size = 0x2000, scoped, tag = 'output window, operand 0, single buffered']
    %10 = vsyncpa [#allocation3], 0
    %11 = vsyncpa [#allocation6], 0
    %12 = vsyncpa [#allocation4], 0
    // Predicated region
    $region2: #{tpu_custom_call.1} parent=1 // pred_check
      _
    $region3: #{tpu_custom_call.1} parent=1 // pred_check_branch
      %14 = sbr.rel (0) target = $region5
    $region4: #{tpu_custom_call.1} parent=1 // pred_region
      %16 = vsyncadd [#allocation3], 0
      %s17 = sshll.u32 %s0, 4
      %s18 = int_to_ptr.hbm [resolvable:$true] %s17
      %s19 = sshll.u32 [#allocation2], 4
      %s20 = int_to_ptr.vmem [resolvable:$true] %s19
      %25 = dma.hbm_to_vmem [thread:$0]  %s18, 128, %s20, [#allocation3], 64, 64, 4
    $region5: #{tpu_custom_call.1} parent=1 // pred_fallthru
      _
    // Predicated region
    $region6: #{tpu_custom_call.1} parent=1 // pred_check
      _
    $region7: #{tpu_custom_call.1} parent=1 // pred_check_branch
      %27 = sbr.rel (0) target = $region9
    $region8: #{tpu_custom_call.1} parent=1 // pred_region
      %29 = vsyncadd [#allocation6], 0
      %s30 = sshll.u32 %s1, 4
      %s31 = int_to_ptr.hbm [resolvable:$true] %s30
      %s32 = sshll.u32 [#allocation5], 4
      %s33 = int_to_ptr.vmem [resolvable:$true] %s32
      %38 = dma.hbm_to_vmem [thread:$0]  %s31, 1024, %s33, [#allocation6], 64, 64, 4
    $region9: #{tpu_custom_call.1} parent=1 // pred_fallthru
      _
    // Predicated region
    $region10: #{tpu_custom_call.1} parent=1 // pred_check
      _
    $region11: #{tpu_custom_call.1} parent=1 // pred_check_branch
      %40 = sbr.rel (0) target = $region13
    $region12: #{tpu_custom_call.1} parent=1 // pred_region
      _
    $region13: #{tpu_custom_call.1} parent=1 // pred_fallthru
      _
    // Predicated region
    $region14: #{tpu_custom_call.1} parent=1 // pred_check
      _
    $region15: #{tpu_custom_call.1} parent=1 // pred_check_branch
      %42 = sbr.rel (0) target = $region17
    $region16: #{tpu_custom_call.1} parent=1 // pred_region
      %44 = vsyncadd [#allocation6], 0
      %s45 = sshll.u32 %s3, 4
      %s46 = int_to_ptr.hbm [resolvable:$true] %s45
      %s47 = sshll.u32 [#allocation7], 4
      %s48 = int_to_ptr.vmem [resolvable:$true] %s47
      %53 = dma.hbm_to_vmem [thread:$0]  %s46, 1024, %s48, [#allocation6], 64, 64, 4
    $region17: #{tpu_custom_call.1} parent=1 // pred_fallthru
      _
    // Predicated region
    $region18: #{tpu_custom_call.1} parent=1 // pred_check
      _
    $region19: #{tpu_custom_call.1} parent=1 // pred_check_branch
      %55 = sbr.rel (0) target = $region21
    $region20: #{tpu_custom_call.1} parent=1 // pred_region
      _
    $region21: #{tpu_custom_call.1} parent=1 // pred_fallthru
      _
    // Predicated region
    $region22: #{tpu_custom_call.1} parent=1 // pred_check
      _
    $region23: #{tpu_custom_call.1} parent=1 // pred_check_branch
      %57 = sbr.rel (0) target = $region25
    $region24: #{tpu_custom_call.1} parent=1 // pred_region
      %59 = dma.done [#allocation3], 128
    $region25: #{tpu_custom_call.1} parent=1 // pred_fallthru
      _
    // Predicated region
    $region26: #{tpu_custom_call.1} parent=1 // pred_check
      _
    $region27: #{tpu_custom_call.1} parent=1 // pred_check_branch
      %61 = sbr.rel (0) target = $region29
    $region28: #{tpu_custom_call.1} parent=1 // pred_region
      %63 = dma.done [#allocation6], 1024
    $region29: #{tpu_custom_call.1} parent=1 // pred_fallthru
      _
    // Predicated region
    $region30: #{tpu_custom_call.1} parent=1 // pred_check
      _
    $region31: #{tpu_custom_call.1} parent=1 // pred_check_branch
      %65 = sbr.rel (0) target = $region33
    $region32: #{tpu_custom_call.1} parent=1 // pred_region
      %67 = dma.done [#allocation6], 1024
    $region33: #{tpu_custom_call.1} parent=1 // pred_fallthru
      _
    %v68 = vld [vmem:[#allocation5] sm:$0xf]
    %v69 = vld [vmem:[#allocation5 + $0x4] sm:$0xf]
    %v70 = vld [vmem:[#allocation5 + $0x8] sm:$0xf]
    %v71 = vld [vmem:[#allocation5 + $0xc] sm:$0xf]
    %v72 = vld [vmem:[#allocation5 + $0x10] sm:$0xf]
    %v73 = vld [vmem:[#allocation5 + $0x14] sm:$0xf]
    %v74 = vld [vmem:[#allocation5 + $0x18] sm:$0xf]
    %v75 = vld [vmem:[#allocation5 + $0x1c] sm:$0xf]
    %v76 = vld [vmem:[#allocation5 + $0x20] sm:$0xf]
    %v77 = vld [vmem:[#allocation5 + $0x24] sm:$0xf]
    %v78 = vld [vmem:[#allocation5 + $0x28] sm:$0xf]
    %v79 = vld [vmem:[#allocation5 + $0x2c] sm:$0xf]
    %v80 = vld [vmem:[#allocation5 + $0x30] sm:$0xf]
    %v81 = vld [vmem:[#allocation5 + $0x34] sm:$0xf]
    %v82 = vld [vmem:[#allocation5 + $0x38] sm:$0xf]
    %v83 = vld [vmem:[#allocation5 + $0x3c] sm:$0xf]
    %v84 = vld [vmem:[#allocation7] sm:$0xf]
    %v85 = vld [vmem:[#allocation7 + $0x4] sm:$0xf]
    %v86 = vld [vmem:[#allocation7 + $0x8] sm:$0xf]
    %v87 = vld [vmem:[#allocation7 + $0xc] sm:$0xf]
    %v88 = vld [vmem:[#allocation7 + $0x10] sm:$0xf]
    %v89 = vld [vmem:[#allocation7 + $0x14] sm:$0xf]
    %v90 = vld [vmem:[#allocation7 + $0x18] sm:$0xf]
    %v91 = vld [vmem:[#allocation7 + $0x1c] sm:$0xf]
    %v92 = vld [vmem:[#allocation7 + $0x20] sm:$0xf]
    %v93 = vld [vmem:[#allocation7 + $0x24] sm:$0xf]
    %v94 = vld [vmem:[#allocation7 + $0x28] sm:$0xf]
    %v95 = vld [vmem:[#allocation7 + $0x2c] sm:$0xf]
    %v96 = vld [vmem:[#allocation7 + $0x30] sm:$0xf]
    %v97 = vld [vmem:[#allocation7 + $0x34] sm:$0xf]
    %v98 = vld [vmem:[#allocation7 + $0x38] sm:$0xf]
    %v99 = vld [vmem:[#allocation7 + $0x3c] sm:$0xf]
    %v100 = vld [vmem:[%s2] sm:$0x1]
    %v101 = vld [vmem:[%s4] sm:$0x1]
    %v102 = vld [vmem:[#allocation2] sm:$0xf]
    %v104 = vperm.slane %v100, 0
    %v122 = vunpack.c.l.b16 %v68
    %v123 = vunpack.c.l.b16 %v69
    %v124 = vunpack.c.l.b16 %v70
    %v125 = vunpack.c.l.b16 %v71
    %v126 = vunpack.c.l.b16 %v72
    %v127 = vunpack.c.l.b16 %v73
    %v128 = vunpack.c.l.b16 %v74
    %v129 = vunpack.c.l.b16 %v75
    %v130 = vunpack.c.l.b16 %v76
    %v131 = vunpack.c.l.b16 %v77
    %v132 = vunpack.c.l.b16 %v78
    %v133 = vunpack.c.l.b16 %v79
    %v134 = vunpack.c.l.b16 %v80
    %v135 = vunpack.c.l.b16 %v81
    %v136 = vunpack.c.l.b16 %v82
    %v137 = vunpack.c.l.b16 %v83
    %v138 = vpack.c.b16 %v123, %v122
    %v139 = vpack.c.b16 %v125, %v124
    %v140 = vpack.c.b16 %v127, %v126
    %v141 = vpack.c.b16 %v129, %v128
    %v142 = vpack.c.b16 %v131, %v130
    %v143 = vpack.c.b16 %v133, %v132
    %v144 = vpack.c.b16 %v135, %v134
    %v145 = vpack.c.b16 %v137, %v136
    %154 = vmatpush.bf16.msra.mxu0 %v145
    %155 = vmatpush.bf16.msra.mxu0 %v144
    %156 = vmatpush.bf16.msra.mxu0 %v143
    %157 = vmatpush.bf16.msra.mxu0 %v142
    %158 = vmatpush.bf16.msra.mxu0 %v141
    %159 = vmatpush.bf16.msra.mxu0 %v140
    %160 = vmatpush.bf16.msra.mxu0 %v139
    %161 = vmatpush.bf16.msra.mxu0 %v138
    %162 = vmatmul.bf16.gmra.mxu0 %v102
    %v163 = vpop.f32.mrf.mxu0
    %v164 = vadd.f32 %v104, %v163
    %v165 = vpop.f32.mrf.mxu0
    %166 = vdwg.mxu0
    %v167 = vmax.f32 %v164, 0.0
    %v168 = vpack.c.bf16 %v167, %v167
    %v170 = vperm.slane %v101, 0
    %v188 = vunpack.c.l.b16 %v84
    %v189 = vunpack.c.l.b16 %v85
    %v190 = vunpack.c.l.b16 %v86
    %v191 = vunpack.c.l.b16 %v87
    %v192 = vunpack.c.l.b16 %v88
    %v193 = vunpack.c.l.b16 %v89
    %v194 = vunpack.c.l.b16 %v90
    %v195 = vunpack.c.l.b16 %v91
    %v196 = vunpack.c.l.b16 %v92
    %v197 = vunpack.c.l.b16 %v93
    %v198 = vunpack.c.l.b16 %v94
    %v199 = vunpack.c.l.b16 %v95
    %v200 = vunpack.c.l.b16 %v96
    %v201 = vunpack.c.l.b16 %v97
    %v202 = vunpack.c.l.b16 %v98
    %v203 = vunpack.c.l.b16 %v99
    %v204 = vpack.c.b16 %v189, %v188
    %v205 = vpack.c.b16 %v191, %v190
    %v206 = vpack.c.b16 %v193, %v192
    %v207 = vpack.c.b16 %v195, %v194
    %v208 = vpack.c.b16 %v197, %v196
    %v209 = vpack.c.b16 %v199, %v198
    %v210 = vpack.c.b16 %v201, %v200
    %v211 = vpack.c.b16 %v203, %v202
    %220 = vmatpush.bf16.msra.mxu0 %v211
    %221 = vmatpush.bf16.msra.mxu0 %v210
    %222 = vmatpush.bf16.msra.mxu0 %v209
    %223 = vmatpush.bf16.msra.mxu0 %v208
    %224 = vmatpush.bf16.msra.mxu0 %v207
    %225 = vmatpush.bf16.msra.mxu0 %v206
    %226 = vmatpush.bf16.msra.mxu0 %v205
    %227 = vmatpush.bf16.msra.mxu0 %v204
    %228 = vmatmul.bf16.gmra.mxu0 %v168
    %v229 = vpop.f32.mrf.mxu0
    %v230 = vadd.f32 %v170, %v229
    %v231 = vpop.f32.mrf.mxu0
    %232 = vdwg.mxu0
    %233 = vst [vmem:[#allocation8] sm:$0xff] %v230
    %v234 = vld [vmem:[#allocation2 + $0x4] sm:$0xf]
    %235 = vmatpush.bf16.msra.mxu0 %v145
    %236 = vmatpush.bf16.msra.mxu0 %v144
    %237 = vmatpush.bf16.msra.mxu0 %v143
    %238 = vmatpush.bf16.msra.mxu0 %v142
    %239 = vmatpush.bf16.msra.mxu0 %v141
    %240 = vmatpush.bf16.msra.mxu0 %v140
    %241 = vmatpush.bf16.msra.mxu0 %v139
    %242 = vmatpush.bf16.msra.mxu0 %v138
    %243 = vmatmul.bf16.gmra.mxu0 %v234
    %v244 = vpop.f32.mrf.mxu0
    %v245 = vadd.f32 %v104, %v244
    %v246 = vpop.f32.mrf.mxu0
    %247 = vdwg.mxu0
    %v248 = vmax.f32 %v245, 0.0
    %v249 = vpack.c.bf16 %v248, %v248
    %250 = vmatpush.bf16.msra.mxu0 %v211
    %251 = vmatpush.bf16.msra.mxu0 %v210
    %252 = vmatpush.bf16.msra.mxu0 %v209
    %253 = vmatpush.bf16.msra.mxu0 %v208
    %254 = vmatpush.bf16.msra.mxu0 %v207
    %255 = vmatpush.bf16.msra.mxu0 %v206
    %256 = vmatpush.bf16.msra.mxu0 %v205
    %257 = vmatpush.bf16.msra.mxu0 %v204
    %258 = vmatmul.bf16.gmra.mxu0 %v249
    %v259 = vpop.f32.mrf.mxu0
    %v260 = vadd.f32 %v170, %v259
    %v261 = vpop.f32.mrf.mxu0
    %262 = vdwg.mxu0
    %263 = vst [vmem:[#allocation8 + $0x8] sm:$0xff] %v260
    // Predicated region
    $region34: #{tpu_custom_call.1} parent=1 // pred_check
      _
    $region35: #{tpu_custom_call.1} parent=1 // pred_check_branch
      %265 = sbr.rel (0) target = $region37
    $region36: #{tpu_custom_call.1} parent=1 // pred_region
      %267 = vsyncadd [#allocation4], 0
      %s268 = sshll.u32 [#allocation8], 4
      %s269 = int_to_ptr.vmem [resolvable:$true] %s268
      %s270 = sshll.u32 %s5, 4
      %s271 = int_to_ptr.hbm [resolvable:$true] %s270
      %276 = dma.vmem_to_hbm [thread:$0]  %s269, 256, %s271, [#allocation4], 128, 128, 8
    $region37: #{tpu_custom_call.1} parent=1 // pred_fallthru
      _
    // Predicated region
    $region38: #{tpu_custom_call.1} parent=1 // pred_check
      _
    $region39: #{tpu_custom_call.1} parent=1 // pred_check_branch
      %278 = sbr.rel (0) target = $region41
    $region40: #{tpu_custom_call.1} parent=1 // pred_region
      %280 = dma.done [#allocation4], 256
    $region41: #{tpu_custom_call.1} parent=1 // pred_fallthru
      _
    %281 = vsyncpa [#allocation3], 1
    %282 = vsyncpa [#allocation6], 1
    %283 = vsyncpa [#allocation4], 1

</llo_original>
